<compile_context>
chip_gen: v7x
topology: tpu7x:2x2x1
jax: 0.10.0
libtpu: 0.0.40
codegen_flags: <defaults>
</compile_context>

<pallas_src>
import jax
import jax.numpy as jnp
from jax.experimental import pallas as pl
from jax.experimental.pallas import tpu as pltpu

# test-mode noise sigmas, exactly as in add_noise(test=True)
SIG_SHOT = (0.01 - 0.0001) / 2.0    # 0.00495
SIG_READ = (0.03 - 0.001) / 2.0     # 0.0145


def _quad_kernel(nf_ref, video_ref, noise_ref, out_ref):
    # nf_ref:    (tile_rows, 128)           per-pixel exposure length in {1, 4, 8}
    # video_ref: (1, T, tile_rows, 128)     one batch element, one spatial tile
    # noise_ref: (1, 2, tile_rows, 128)     [shot_noise, read_noise]
    # out_ref:   (1, tile_rows, 128)
    T = video_ref.shape[1]
    nf = nf_ref[...]                                   # (tile_rows, 128)

    # Streaming masked temporal accumulation, strength-reduced:
    #   frame 0 always exposed (nf >= 1)
    #   frames 1..3 exposed iff nf > 1  (nf in {4, 8})
    #   frames 4..7 exposed iff nf > 4  (nf == 8)
    acc = video_ref[0, 0]                              # (tile_rows, 128)

    t_mid_end = min(T, 4)
    if t_mid_end > 1:
        s_mid = video_ref[0, 1]
        for t in range(2, t_mid_end):                  # static unroll, tiny
            s_mid = s_mid + video_ref[0, t]
        acc = acc + jnp.where(nf > 1.0, s_mid, 0.0)

    if T > 4:
        s_hi = video_ref[0, 4]
        for t in range(5, T):                          # static unroll, tiny
            s_hi = s_hi + video_ref[0, t]
        acc = acc + jnp.where(nf > 4.0, s_hi, 0.0)

    # (sum / num_frames) * (num_frames / 8) == sum / 8  (exact: powers of two)
    img = acc * 0.125
    out = img + jnp.sqrt(img) * SIG_SHOT * noise_ref[0, 0] \
              + SIG_READ * noise_ref[0, 1]
    out_ref[0] = jnp.clip(out, 0.0, 1.0)


def make_quad_num_frames(H, W):
    """Per-pixel exposure length of the Quad shutter (matches Quad.__init__)."""
    nf = jnp.ones((H, W), jnp.float32)
    nf = nf.at[0::2, 0::2].set(8.0)
    nf = nf.at[1::2, 0::2].set(4.0)
    nf = nf.at[0::2, 1::2].set(4.0)
    # odd-odd pixels stay at 1
    return nf


def _choose_tiling(HW, T, budget_bytes):
    """Pick (tile_rows, R_pad): rows of 128 f32 lanes per spatial tile, and the
    padded row count so the grid divides evenly (no oversized fallback block)."""
    R = pl.cdiv(HW, 128)                               # rows of 128 lanes
    # biggest multiple-of-8 row count whose f32 video block fits the budget
    rows = max(8, ((budget_bytes // (T * 128 * 4)) // 8) * 8)
    if rows >= R:
        rows = pl.cdiv(R, 8) * 8                       # single spatial tile
    R_pad = pl.cdiv(R, rows) * rows
    return rows, R_pad


def quad_forward(video_block, num_frames, noise_shot, noise_read,
                 *, budget_bytes=2 << 20):
    """video_block: (B, T, H, W) f32; num_frames: (H, W) f32 in {1,4,8};
       noise_*: (B, 1, H, W) f32 standard normal. Returns (B, 1, H, W) f32."""
    B, T, H, W = video_block.shape

    # Frames beyond index 7 never pass the Quad shutter (nf <= 8): drop them
    # before generating any HBM traffic for them.
    T_eff = min(T, 8)
    video_block = video_block[:, :T_eff]

    HW = H * W
    tile_rows, R_pad = _choose_tiling(HW, T_eff, budget_bytes)
    n_s = R_pad // tile_rows
    pad = R_pad * 128 - HW

    # lane-dense reshapes + padding (layout plumbing only, no compute)
    vid = video_block.astype(jnp.float32).reshape(B, T_eff, HW)
    nf = num_frames.astype(jnp.float32).reshape(HW)
    noise = jnp.stack(
        [noise_shot.astype(jnp.float32).reshape(B, HW),
         noise_read.astype(jnp.float32).reshape(B, HW)], axis=1)   # (B, 2, HW)
    if pad:
        vid = jnp.pad(vid, ((0, 0), (0, 0), (0, pad)))
        nf = jnp.pad(nf, ((0, pad),), constant_values=1.0)
        noise = jnp.pad(noise, ((0, 0), (0, 0), (0, pad)))
    vid = vid.reshape(B, T_eff, R_pad, 128)
    nf = nf.reshape(R_pad, 128)
    noise = noise.reshape(B, 2, R_pad, 128)

    # VMEM footprint: ~2 * tile_rows * 512 * (T_eff + 4) bytes (double-buffered
    # video + noise + nf + out); set the scoped limit explicitly with headroom.
    vmem_need = 2 * tile_rows * 128 * 4 * (T_eff + 4) + (2 << 20)
    vmem_limit = min(max(vmem_need, 16 << 20), 32 << 20)

    out = pl.pallas_call(
        _quad_kernel,
        out_shape=jax.ShapeDtypeStruct((B, R_pad, 128), jnp.float32),
        grid=(n_s, B),                # spatial outer (nf re-DMA only when s changes)
        in_specs=[
            pl.BlockSpec((tile_rows, 128), lambda s, b: (s, 0)),               # num_frames
            pl.BlockSpec((1, T_eff, tile_rows, 128), lambda s, b: (b, 0, s, 0)),  # video
            pl.BlockSpec((1, 2, tile_rows, 128), lambda s, b: (b, 0, s, 0)),      # noise
        ],
        out_specs=pl.BlockSpec((1, tile_rows, 128), lambda s, b: (b, s, 0)),
        compiler_params=pltpu.CompilerParams(
            dimension_semantics=("parallel", "parallel"),
            vmem_limit_bytes=vmem_limit),
    )(nf, vid, noise)

    # strip spatial padding and restore (B, 1, H, W)
    return out.reshape(B, R_pad * 128)[:, :HW].reshape(B, 1, H, W)


if __name__ == "__main__":
    # block_size = (T, H, W) = (8, 16, 16); batch = 2
    B, T, H, W = 2, 8, 16, 16

    key = jax.random.PRNGKey(0)
    k_vid, k_ns, k_nr = jax.random.split(key, 3)

    video = jax.random.uniform(k_vid, (B, T, H, W), dtype=jnp.float32)     # frames in [0,1]
    noise_shot = jax.random.normal(k_ns, (B, 1, H, W), dtype=jnp.float32)  # stand-in for randn_like
    noise_read = jax.random.normal(k_nr, (B, 1, H, W), dtype=jnp.float32)

    num_frames = make_quad_num_frames(H, W)

    out = quad_forward(video, num_frames, noise_shot, noise_read)
    jax.block_until_ready(out)

    # pure-JAX reference, mirroring the (unsimplified) PyTorch graph
    shutter = (jnp.arange(T, dtype=jnp.float32)[:, None, None]
               < num_frames[None]).astype(jnp.float32)                 # (T,H,W)
    meas = jnp.sum(video * shutter[None], axis=1, keepdims=True)       # (B,1,H,W)
    meas = meas / num_frames[None, None]
    img = meas * (num_frames[None, None] / 8.0)
    ref = jnp.clip(img + jnp.sqrt(img) * SIG_SHOT * noise_shot
                   + SIG_READ * noise_read, 0.0, 1.0)

    assert out.shape == (B, 1, H, W)
    assert jnp.allclose(out, ref, atol=1e-5, rtol=1e-5)
    print("KERNEL_OK")
</pallas_src>

<mosaic_0001>
module attributes {stable_mosaic.version = 11 : i64} {
  func.func @_quad_kernel(%arg0: i32, %arg1: i32, %arg2: memref<8x128xf32, #tpu.memory_space<vmem>>, %arg3: memref<1x8x8x128xf32, #tpu.memory_space<vmem>>, %arg4: memref<1x2x8x128xf32, #tpu.memory_space<vmem>>, %arg5: memref<1x8x128xf32, #tpu.memory_space<vmem>>) attributes {dimension_semantics = [#tpu.dimension_semantics<parallel>, #tpu.dimension_semantics<parallel>], iteration_bounds = array<i64: 1, 2>, scalar_prefetch = 0 : i64, scratch_operands = 0 : i64, tpu.core_type = #tpu.core_type<tc>, window_params = [{transform_indices = @transform_0, window_bounds = array<i64: 8, 128>}, {transform_indices = @transform_1, window_bounds = array<i64: 1, 8, 8, 128>}, {transform_indices = @transform_2, window_bounds = array<i64: 1, 2, 8, 128>}, {transform_indices = @transform_3, window_bounds = array<i64: 1, 8, 128>}]} {
    %c0 = arith.constant 0 : index
    %c0_0 = arith.constant 0 : index
    %0 = vector.load %arg2[%c0, %c0_0] : memref<8x128xf32, #tpu.memory_space<vmem>>, vector<8x128xf32>
    %c0_1 = arith.constant 0 : index
    %c0_2 = arith.constant 0 : index
    %c0_3 = arith.constant 0 : index
    %c0_4 = arith.constant 0 : index
    %1 = vector.load %arg3[%c0_1, %c0_2, %c0_3, %c0_4] : memref<1x8x8x128xf32, #tpu.memory_space<vmem>>, vector<1x1x8x128xf32>
    %2 = vector.shape_cast %1 : vector<1x1x8x128xf32> to vector<8x128xf32>
    %c0_5 = arith.constant 0 : index
    %c1 = arith.constant 1 : index
    %c0_6 = arith.constant 0 : index
    %c0_7 = arith.constant 0 : index
    %3 = vector.load %arg3[%c0_5, %c1, %c0_6, %c0_7] : memref<1x8x8x128xf32, #tpu.memory_space<vmem>>, vector<1x1x8x128xf32>
    %4 = vector.shape_cast %3 : vector<1x1x8x128xf32> to vector<8x128xf32>
    %c0_8 = arith.constant 0 : index
    %c2 = arith.constant 2 : index
    %c0_9 = arith.constant 0 : index
    %c0_10 = arith.constant 0 : index
    %5 = vector.load %arg3[%c0_8, %c2, %c0_9, %c0_10] : memref<1x8x8x128xf32, #tpu.memory_space<vmem>>, vector<1x1x8x128xf32>
    %6 = vector.shape_cast %5 : vector<1x1x8x128xf32> to vector<8x128xf32>
    %7 = arith.addf %4, %6 : vector<8x128xf32>
    %c0_11 = arith.constant 0 : index
    %c3 = arith.constant 3 : index
    %c0_12 = arith.constant 0 : index
    %c0_13 = arith.constant 0 : index
    %8 = vector.load %arg3[%c0_11, %c3, %c0_12, %c0_13] : memref<1x8x8x128xf32, #tpu.memory_space<vmem>>, vector<1x1x8x128xf32>
    %9 = vector.shape_cast %8 : vector<1x1x8x128xf32> to vector<8x128xf32>
    %10 = arith.addf %7, %9 : vector<8x128xf32>
    %cst = arith.constant 1.000000e+00 : f32
    %11 = vector.broadcast %cst : f32 to vector<8x128xf32>
    %12 = arith.cmpf ogt, %0, %11 : vector<8x128xf32>
    %cst_14 = arith.constant 0.000000e+00 : f32
    %13 = vector.broadcast %cst_14 : f32 to vector<8x128xf32>
    %14 = arith.select %12, %10, %13 : vector<8x128xi1>, vector<8x128xf32>
    %15 = arith.addf %2, %14 : vector<8x128xf32>
    %c0_15 = arith.constant 0 : index
    %c4 = arith.constant 4 : index
    %c0_16 = arith.constant 0 : index
    %c0_17 = arith.constant 0 : index
    %16 = vector.load %arg3[%c0_15, %c4, %c0_16, %c0_17] : memref<1x8x8x128xf32, #tpu.memory_space<vmem>>, vector<1x1x8x128xf32>
    %17 = vector.shape_cast %16 : vector<1x1x8x128xf32> to vector<8x128xf32>
    %c0_18 = arith.constant 0 : index
    %c5 = arith.constant 5 : index
    %c0_19 = arith.constant 0 : index
    %c0_20 = arith.constant 0 : index
    %18 = vector.load %arg3[%c0_18, %c5, %c0_19, %c0_20] : memref<1x8x8x128xf32, #tpu.memory_space<vmem>>, vector<1x1x8x128xf32>
    %19 = vector.shape_cast %18 : vector<1x1x8x128xf32> to vector<8x128xf32>
    %20 = arith.addf %17, %19 : vector<8x128xf32>
    %c0_21 = arith.constant 0 : index
    %c6 = arith.constant 6 : index
    %c0_22 = arith.constant 0 : index
    %c0_23 = arith.constant 0 : index
    %21 = vector.load %arg3[%c0_21, %c6, %c0_22, %c0_23] : memref<1x8x8x128xf32, #tpu.memory_space<vmem>>, vector<1x1x8x128xf32>
    %22 = vector.shape_cast %21 : vector<1x1x8x128xf32> to vector<8x128xf32>
    %23 = arith.addf %20, %22 : vector<8x128xf32>
    %c0_24 = arith.constant 0 : index
    %c7 = arith.constant 7 : index
    %c0_25 = arith.constant 0 : index
    %c0_26 = arith.constant 0 : index
    %24 = vector.load %arg3[%c0_24, %c7, %c0_25, %c0_26] : memref<1x8x8x128xf32, #tpu.memory_space<vmem>>, vector<1x1x8x128xf32>
    %25 = vector.shape_cast %24 : vector<1x1x8x128xf32> to vector<8x128xf32>
    %26 = arith.addf %23, %25 : vector<8x128xf32>
    %cst_27 = arith.constant 4.000000e+00 : f32
    %27 = vector.broadcast %cst_27 : f32 to vector<8x128xf32>
    %28 = arith.cmpf ogt, %0, %27 : vector<8x128xf32>
    %cst_28 = arith.constant 0.000000e+00 : f32
    %29 = vector.broadcast %cst_28 : f32 to vector<8x128xf32>
    %30 = arith.select %28, %26, %29 : vector<8x128xi1>, vector<8x128xf32>
    %31 = arith.addf %15, %30 : vector<8x128xf32>
    %cst_29 = arith.constant 1.250000e-01 : f32
    %32 = vector.broadcast %cst_29 : f32 to vector<8x128xf32>
    %33 = arith.mulf %31, %32 : vector<8x128xf32>
    %34 = math.sqrt %33 : vector<8x128xf32>
    %cst_30 = arith.constant 4.950000e-03 : f32
    %35 = vector.broadcast %cst_30 : f32 to vector<8x128xf32>
    %36 = arith.mulf %34, %35 : vector<8x128xf32>
    %c0_31 = arith.constant 0 : index
    %c0_32 = arith.constant 0 : index
    %c0_33 = arith.constant 0 : index
    %c0_34 = arith.constant 0 : index
    %37 = vector.load %arg4[%c0_31, %c0_32, %c0_33, %c0_34] : memref<1x2x8x128xf32, #tpu.memory_space<vmem>>, vector<1x1x8x128xf32>
    %38 = vector.shape_cast %37 : vector<1x1x8x128xf32> to vector<8x128xf32>
    %39 = arith.mulf %36, %38 : vector<8x128xf32>
    %40 = arith.addf %33, %39 : vector<8x128xf32>
    %c0_35 = arith.constant 0 : index
    %c1_36 = arith.constant 1 : index
    %c0_37 = arith.constant 0 : index
    %c0_38 = arith.constant 0 : index
    %41 = vector.load %arg4[%c0_35, %c1_36, %c0_37, %c0_38] : memref<1x2x8x128xf32, #tpu.memory_space<vmem>>, vector<1x1x8x128xf32>
    %42 = vector.shape_cast %41 : vector<1x1x8x128xf32> to vector<8x128xf32>
    %cst_39 = arith.constant 1.450000e-02 : f32
    %43 = vector.broadcast %cst_39 : f32 to vector<8x128xf32>
    %44 = arith.mulf %43, %42 : vector<8x128xf32>
    %45 = arith.addf %40, %44 : vector<8x128xf32>
    %cst_40 = arith.constant 0.000000e+00 : f32
    %cst_41 = arith.constant 1.000000e+00 : f32
    %46 = vector.broadcast %cst_40 : f32 to vector<8x128xf32>
    %47 = arith.maximumf %46, %45 : vector<8x128xf32>
    %48 = vector.broadcast %cst_41 : f32 to vector<8x128xf32>
    %49 = arith.minimumf %48, %47 : vector<8x128xf32>
    %c0_42 = arith.constant 0 : index
    %c0_43 = arith.constant 0 : index
    %c0_44 = arith.constant 0 : index
    %50 = vector.load %arg5[%c0_42, %c0_43, %c0_44] : memref<1x8x128xf32, #tpu.memory_space<vmem>>, vector<1x8x128xf32>
    %51 = vector.shape_cast %50 : vector<1x8x128xf32> to vector<8x128xf32>
    %52 = vector.shape_cast %49 : vector<8x128xf32> to vector<1x8x128xf32>
    tpu.vector_store %arg5[%c0_42, %c0_43, %c0_44], %52 {strides = array<i32>} : memref<1x8x128xf32, #tpu.memory_space<vmem>>, vector<1x8x128xf32>,
    return
  }
  func.func @transform_0(%arg0: i32, %arg1: i32) -> (i32, i32) {
    %c0_i32 = arith.constant 0 : i32
    %c0_i32_0 = arith.constant 0 : i32
    return %arg0, %c0_i32 : i32, i32
  }
  func.func @transform_1(%arg0: i32, %arg1: i32) -> (i32, i32, i32, i32) {
    %c0_i32 = arith.constant 0 : i32
    %c0_i32_0 = arith.constant 0 : i32
    %c0_i32_1 = arith.constant 0 : i32
    return %arg1, %c0_i32, %arg0, %c0_i32_0 : i32, i32, i32, i32
  }
  func.func @transform_2(%arg0: i32, %arg1: i32) -> (i32, i32, i32, i32) {
    %c0_i32 = arith.constant 0 : i32
    %c0_i32_0 = arith.constant 0 : i32
    %c0_i32_1 = arith.constant 0 : i32
    return %arg1, %c0_i32, %arg0, %c0_i32_0 : i32, i32, i32, i32
  }
  func.func @transform_3(%arg0: i32, %arg1: i32) -> (i32, i32, i32) {
    %c0_i32 = arith.constant 0 : i32
    %c0_i32_0 = arith.constant 0 : i32
    return %arg1, %arg0, %c0_i32 : i32, i32, i32
  }
}

</mosaic_0001>

<llo_original>
// kernel: tpu_custom_call.1
$region0: #{tpu_custom_call.1}
  #allocation0 [shape = 'u32[]', space=smem, size = 0x4, offset = 0x4, fixed_abs, tag = 'smem constant byte address 0x4 - core index']
  #allocation1 [shape = 'u32[144,128]{1,0:T(1,128)}', space=vmem, size = 0x12000, scoped, tag = 'internal scratch']
  %s0 = inlined_call_operand.hbm [shape: f32[8,128], index: 0, kind: input, shape index: {}]
  %s1 = inlined_call_operand.hbm [shape: f32[2,8,8,128], index: 1, kind: input, shape index: {}]
  %s2 = inlined_call_operand.hbm [shape: f32[2,2,8,128], index: 2, kind: input, shape index: {}]
  %s3 = inlined_call_operand.hbm [shape: f32[2,8,128], index: 3, kind: output, shape index: {}]
  %s4 = sld [smem:[#allocation0]]
  $region57: #{tpu_custom_call.1} parent=0
    _
  %s6 = ssub.s32 1, %s4
  %s7 = scalar_select 0, %s6, %s4
  $region1: #{tpu_custom_call.1} parent=0
    #allocation2 [shape = 'u8[4096]{0}', space=vmem, size = 0x1000, scoped, tag = 'input window, operand 0, single buffered']
    #allocation3 [shape = 's32[2]{0}', space=sflag, size = 0x8, scoped, tag = 'scoped memory for tpu_custom_call.1']
    #allocation4 [shape = 's32[2]{0}', space=sflag, size = 0x8, scoped, tag = 'scoped memory for tpu_custom_call.1']
    #allocation5 [shape = 'u8[65536]{0}', space=vmem, size = 0x10000, scoped, tag = 'input window, operand 1']
    #allocation6 [shape = 's32[2]{0}', space=sflag, size = 0x8, scoped, tag = 'scoped memory for tpu_custom_call.1']
    #allocation7 [shape = 'u8[16384]{0}', space=vmem, size = 0x4000, scoped, tag = 'input window, operand 2']
    #allocation8 [shape = 'u8[8192]{0}', space=vmem, size = 0x2000, scoped, tag = 'output window, operand 0']
    %8 = vsyncpa [#allocation3], 0
    %9 = vsyncpa [#allocation6], 0
    %s10 = scalar_lea.sflag [#allocation6], 1
    %11 = vsyncpa %s10, 0
    %12 = vsyncpa [#allocation4], 0
    %s13 = scalar_lea.sflag [#allocation4], 1
    %14 = vsyncpa %s13, 0
    loop: start=0, step=1, limit=4
    $region2: #{tpu_custom_call.1} parent=1 // loop_pre_header
      _
    $region3: #{tpu_custom_call.1} parent=1 // loop_header
      %s16 = sphi 0, %s20
      %p17 = scmp.ge.s32.totalorder %s16, 4
      %s23 = sphi 0, %s35
      %s24 = sphi 0, %s31
      %s25 = sphi 0, %s23
      %s26 = sphi 0, %s24
      %s27 = sphi 0, %s25
      %s28 = sphi 0, %s26
      %s38 = sphi 0, %s40
      %s41 = sphi 0, %s38
      %s42 = sphi 0, %s41
      %s58 = sphi 0, %s42
      %s66 = sphi 0, %s68
      %s69 = sphi 0, %s66
      %s70 = sphi 0, %s69
      %s86 = sphi 0, %s70
      %s94 = sphi 0, %s96
      %s97 = sphi 0, %s94
      %s98 = sphi 0, %s97
      %s114 = sphi 0, %s98
      %s122 = sphi 0, %s124
      %s125 = sphi 0, %s122
      %s126 = sphi 0, %s125
      %s142 = sphi 0, %s126
    $region4: #{tpu_custom_call.1} parent=1 // loop_header_branch
      %19 = sbr.rel (%p17) target = $region8
    $region5: #{tpu_custom_call.1} parent=1 // loop_body
      %s21 = ssub.s32 %s16, 1
      %s22 = ssub.s32 %s16, 2
      %s29 = sadd.s32 1, %s24
      %p30 = scmp.ge.s32.totalorder %s29, 2
      %s31 = scalar_select %p30, 0, %s29
      %s32 = sadd.s32 1, %s23
      %s33 = scalar_select %p30, %s32, %s23
      %p34 = scmp.ge.s32.totalorder %s33, 1
      %s35 = scalar_select %p34, 0, %s33
      %s36 = ssub.s32 %s23, %s35
      %p37 = scmp.eq.s32.totalorder %s36, 0
      %s39 = sadd.s32 %s38, 1
      %s40 = scalar_select %p37, %s38, %s39
      %p43 = pneg %p37
      %p44 = scmp.eq.s32.totalorder %s16, 1
      %p45 = por %p43, %p44
      %p46 = scmp.ne.s32.totalorder %s38, %s41
      %p47 = scmp.eq.s32.totalorder %s16, 0
      %p48 = por %p46, %p47
      %p49 = scmp.ne.s32.totalorder %s38, %s41
      %p50 = scmp.eq.s32.totalorder %s21, 1
      %p51 = por %p49, %p50
      %p52 = scmp.ne.s32.totalorder %s41, %s42
      %p53 = scmp.eq.s32.totalorder %s21, 0
      %p54 = por %p52, %p53
      %p55 = scmp.ne.s32.totalorder %s41, %s42
      %p56 = scmp.eq.s32.totalorder %s22, 1
      %p57 = por %p55, %p56
      %p59 = scmp.ne.s32.totalorder %s42, %s58
      %p60 = scmp.eq.s32.totalorder %s22, 0
      %p61 = por %p59, %p60
      %s62 = ssub.s32 %s24, %s31
      %s63 = ssub.s32 %s23, %s35
      %s64 = sor.u32 %s62, %s63
      %p65 = scmp.eq.s32.totalorder %s64, 0
      %s67 = sadd.s32 %s66, 1
      %s68 = scalar_select %p65, %s66, %s67
      %p71 = pneg %p65
      %p72 = scmp.eq.s32.totalorder %s16, 1
      %p73 = por %p71, %p72
      %p74 = scmp.ne.s32.totalorder %s66, %s69
      %p75 = scmp.eq.s32.totalorder %s16, 0
      %p76 = por %p74, %p75
      %p77 = scmp.ne.s32.totalorder %s66, %s69
      %p78 = scmp.eq.s32.totalorder %s21, 1
      %p79 = por %p77, %p78
      %p80 = scmp.ne.s32.totalorder %s69, %s70
      %p81 = scmp.eq.s32.totalorder %s21, 0
      %p82 = por %p80, %p81
      %p83 = scmp.ne.s32.totalorder %s69, %s70
      %p84 = scmp.eq.s32.totalorder %s22, 1
      %p85 = por %p83, %p84
      %p87 = scmp.ne.s32.totalorder %s70, %s86
      %p88 = scmp.eq.s32.totalorder %s22, 0
      %p89 = por %p87, %p88
      %s90 = ssub.s32 %s24, %s31
      %s91 = ssub.s32 %s23, %s35
      %s92 = sor.u32 %s90, %s91
      %p93 = scmp.eq.s32.totalorder %s92, 0
      %s95 = sadd.s32 %s94, 1
      %s96 = scalar_select %p93, %s94, %s95
      %p99 = pneg %p93
      %p100 = scmp.eq.s32.totalorder %s16, 1
      %p101 = por %p99, %p100
      %p102 = scmp.ne.s32.totalorder %s94, %s97
      %p103 = scmp.eq.s32.totalorder %s16, 0
      %p104 = por %p102, %p103
      %p105 = scmp.ne.s32.totalorder %s94, %s97
      %p106 = scmp.eq.s32.totalorder %s21, 1
      %p107 = por %p105, %p106
      %p108 = scmp.ne.s32.totalorder %s97, %s98
      %p109 = scmp.eq.s32.totalorder %s21, 0
      %p110 = por %p108, %p109
      %p111 = scmp.ne.s32.totalorder %s97, %s98
      %p112 = scmp.eq.s32.totalorder %s22, 1
      %p113 = por %p111, %p112
      %p115 = scmp.ne.s32.totalorder %s98, %s114
      %p116 = scmp.eq.s32.totalorder %s22, 0
      %p117 = por %p115, %p116
      %s118 = ssub.s32 %s24, %s31
      %s119 = ssub.s32 %s23, %s35
      %s120 = sor.u32 %s118, %s119
      %p121 = scmp.eq.s32.totalorder %s120, 0
      %s123 = sadd.s32 %s122, 1
      %s124 = scalar_select %p121, %s122, %s123
      %p127 = pneg %p121
      %p128 = scmp.eq.s32.totalorder %s16, 1
      %p129 = por %p127, %p128
      %p130 = scmp.ne.s32.totalorder %s122, %s125
      %p131 = scmp.eq.s32.totalorder %s16, 0
      %p132 = por %p130, %p131
      %p133 = scmp.ne.s32.totalorder %s122, %s125
      %p134 = scmp.eq.s32.totalorder %s21, 1
      %p135 = por %p133, %p134
      %p136 = scmp.ne.s32.totalorder %s125, %s126
      %p137 = scmp.eq.s32.totalorder %s21, 0
      %p138 = por %p136, %p137
      %p139 = scmp.ne.s32.totalorder %s125, %s126
      %p140 = scmp.eq.s32.totalorder %s22, 1
      %p141 = por %p139, %p140
      %p143 = scmp.ne.s32.totalorder %s126, %s142
      %p144 = scmp.eq.s32.totalorder %s22, 0
      %p145 = por %p143, %p144
      %p146 = scmp.le.s32.totalorder 1, %s16
      %p147 = scmp.lt.s32.totalorder %s16, 3
      %p148 = pnand %p146, %p147
      %p149 = pneg %p148
      // Predicated region
      $region9: #{tpu_custom_call.1} parent=5 // pred_check
        _
      $region10: #{tpu_custom_call.1} parent=5 // pred_check_branch
        %151 = sbr.rel (%p148) target = $region12
      $region11: #{tpu_custom_call.1} parent=5 // pred_region
        %s152 = ssub.s32 %s16, 1
        // Predicated region
        $region13: #{tpu_custom_call.1} parent=11 // pred_check
          %p153 = pneg %p54
        $region14: #{tpu_custom_call.1} parent=11 // pred_check_branch
          %155 = sbr.rel (%p153) target = $region16
        $region15: #{tpu_custom_call.1} parent=11 // pred_region
          %s157 = ssub.s32 128, 128
          %158 = vsyncadd [#allocation3], %s157
          %s159 = smul.addr %s25, 128
          %s160 = scalar_lea.hbm %s0, %s159
          %s162 = sshll.u32 [#allocation2], 4
          %s163 = int_to_ptr.vmem [resolvable:$true] %s162
          %165 = dma.hbm_to_vmem [thread:$0]  %s160, 128, %s163, [#allocation3]
        $region16: #{tpu_custom_call.1} parent=11 // pred_fallthru
          _
      $region12: #{tpu_custom_call.1} parent=5 // pred_fallthru
        _
      %p166 = scmp.lt.s32.totalorder %s16, 2
      // Predicated region
      $region17: #{tpu_custom_call.1} parent=5 // pred_check
        %p167 = pneg %p166
      $region18: #{tpu_custom_call.1} parent=5 // pred_check_branch
        %169 = sbr.rel (%p167) target = $region20
      $region19: #{tpu_custom_call.1} parent=5 // pred_region
        // Predicated region
        $region21: #{tpu_custom_call.1} parent=19 // pred_check
          %p170 = pneg %p76
        $region22: #{tpu_custom_call.1} parent=19 // pred_check_branch
          %172 = sbr.rel (%p170) target = $region24
        $region23: #{tpu_custom_call.1} parent=19 // pred_region
          %s173 = sand.u32 %s16, 1
          %s174 = scalar_lea.sflag [#allocation6], %s173
          %s175 = sand.u32 %s66, 1
          %s176 = smul.addr %s175, 64
          %s177 = scalar_lea.vmem [#allocation5], %s176
          %s179 = ssub.s32 1024, 1024
          %180 = vsyncadd %s174, %s179
          %s181 = smul.addr %s24, 8
          %s182 = sadd.s32 %s23, %s181
          %s183 = smul.addr %s182, 128
          %s184 = scalar_lea.hbm %s1, %s183
          %s185 = sshll.u32 %s177, 4
          %s186 = int_to_ptr.vmem [resolvable:$true] %s185
          %191 = dma.hbm_to_vmem [thread:$0]  %s184, 1024, %s186, %s174, 128, 128, 8
        $region24: #{tpu_custom_call.1} parent=19 // pred_fallthru
          _
        // Predicated region
        $region25: #{tpu_custom_call.1} parent=19 // pred_check
          %p192 = pneg %p104
        $region26: #{tpu_custom_call.1} parent=19 // pred_check_branch
          %194 = sbr.rel (%p192) target = $region28
        $region27: #{tpu_custom_call.1} parent=19 // pred_region
          %s195 = sand.u32 %s16, 1
          %s196 = scalar_lea.sflag [#allocation6], %s195
          %s197 = sand.u32 %s94, 1
          %s198 = smul.addr %s197, 16
          %s199 = scalar_lea.vmem [#allocation7], %s198
          %s201 = ssub.s32 256, 256
          %202 = vsyncadd %s196, %s201
          %s203 = smul.addr %s24, 2
          %s204 = sadd.s32 %s23, %s203
          %s205 = smul.addr %s204, 128
          %s206 = scalar_lea.hbm %s2, %s205
          %s207 = sshll.u32 %s199, 4
          %s208 = int_to_ptr.vmem [resolvable:$true] %s207
          %213 = dma.hbm_to_vmem [thread:$0]  %s206, 256, %s208, %s196, 128, 128, 8
        $region28: #{tpu_custom_call.1} parent=19 // pred_fallthru
          _
      $region20: #{tpu_custom_call.1} parent=5 // pred_fallthru
        _
      %p214 = scmp.le.s32.totalorder 1, %s16
      %p215 = scmp.lt.s32.totalorder %s16, 3
      %p216 = pnand %p214, %p215
      %p217 = pneg %p216
      // Predicated region
      $region29: #{tpu_custom_call.1} parent=5 // pred_check
        _
      $region30: #{tpu_custom_call.1} parent=5 // pred_check_branch
        %219 = sbr.rel (%p216) target = $region32
      $region31: #{tpu_custom_call.1} parent=5 // pred_region
        %s220 = ssub.s32 %s16, 1
        // Predicated region
        $region33: #{tpu_custom_call.1} parent=31 // pred_check
          %p221 = pneg %p54
        $region34: #{tpu_custom_call.1} parent=31 // pred_check_branch
          %223 = sbr.rel (%p221) target = $region36
        $region35: #{tpu_custom_call.1} parent=31 // pred_region
          %224 = dma.done [#allocation3], 128
        $region36: #{tpu_custom_call.1} parent=31 // pred_fallthru
          _
        %s225 = sand.u32 %s21, 1
        %s226 = scalar_lea.sflag [#allocation6], %s225
        %s227 = sand.u32 %s69, 1
        %s228 = smul.addr %s227, 64
        %s229 = scalar_lea.vmem [#allocation5], %s228
        // Predicated region
        $region37: #{tpu_custom_call.1} parent=31 // pred_check
          %p230 = pneg %p82
        $region38: #{tpu_custom_call.1} parent=31 // pred_check_branch
          %232 = sbr.rel (%p230) target = $region40
        $region39: #{tpu_custom_call.1} parent=31 // pred_region
          %233 = dma.done %s226, 1024
        $region40: #{tpu_custom_call.1} parent=31 // pred_fallthru
          _
        %s234 = sand.u32 %s21, 1
        %s235 = scalar_lea.sflag [#allocation6], %s234
        %s236 = sand.u32 %s97, 1
        %s237 = smul.addr %s236, 16
        %s238 = scalar_lea.vmem [#allocation7], %s237
        // Predicated region
        $region41: #{tpu_custom_call.1} parent=31 // pred_check
          %p239 = pneg %p110
        $region42: #{tpu_custom_call.1} parent=31 // pred_check_branch
          %241 = sbr.rel (%p239) target = $region44
        $region43: #{tpu_custom_call.1} parent=31 // pred_region
          %242 = dma.done %s235, 256
        $region44: #{tpu_custom_call.1} parent=31 // pred_fallthru
          _
        %p243 = pneg %p54
        %p244 = pneg %p51
        %s245 = sand.u32 %s21, 1
        %s246 = scalar_lea.sflag [#allocation6], %s245
        %s247 = sand.u32 %s69, 1
        %s248 = smul.addr %s247, 64
        %s249 = scalar_lea.vmem [#allocation5], %s248
        %p250 = pneg %p82
        %p251 = pneg %p79
        %s252 = sand.u32 %s21, 1
        %s253 = scalar_lea.sflag [#allocation6], %s252
        %s254 = sand.u32 %s97, 1
        %s255 = smul.addr %s254, 16
        %s256 = scalar_lea.vmem [#allocation7], %s255
        %p257 = pneg %p110
        %p258 = pneg %p107
        %p259 = pneg %p138
        %p260 = pneg %p135
        %s261 = sand.u32 %s125, 1
        %s262 = scalar_lea.sflag [#allocation4], %s261
        %s263 = sand.u32 %s125, 1
        %s264 = smul.addr %s263, 8
        %s265 = scalar_lea.vmem [#allocation8], %s264
        %v266 = vld [vmem:[#allocation2] sm:$0xff]
        %v267 = vld [vmem:[%s229] sm:$0xff]
        %s268 = scalar_lea.vmem %s229, 8 [#allocation5]
        %v269 = vld [vmem:[%s268] sm:$0xff]
        %s270 = scalar_lea.vmem %s229, 16 [#allocation5]
        %v271 = vld [vmem:[%s270] sm:$0xff]
        %v272 = vadd.f32 %v269, %v271
        %s273 = scalar_lea.vmem %s229, 24 [#allocation5]
        %v274 = vld [vmem:[%s273] sm:$0xff]
        %v275 = vadd.f32 %v272, %v274
        %vm276 = vcmp.gt.f32.partialorder %v266, 1.0
        %v277 = vsel %vm276, %v275, 0.0
        %v278 = vadd.f32 %v267, %v277
        %s279 = scalar_lea.vmem %s229, 32 [#allocation5]
        %v280 = vld [vmem:[%s279] sm:$0xff]
        %s281 = scalar_lea.vmem %s229, 40 [#allocation5]
        %v282 = vld [vmem:[%s281] sm:$0xff]
        %v283 = vadd.f32 %v280, %v282
        %s284 = scalar_lea.vmem %s229, 48 [#allocation5]
        %v285 = vld [vmem:[%s284] sm:$0xff]
        %v286 = vadd.f32 %v283, %v285
        %s287 = scalar_lea.vmem %s229, 56 [#allocation5]
        %v288 = vld [vmem:[%s287] sm:$0xff]
        %v289 = vadd.f32 %v286, %v288
        %vm290 = vcmp.gt.f32.partialorder %v266, 4.0
        %v291 = vsel %vm290, %v289, 0.0
        %v292 = vadd.f32 %v278, %v291
        %v293 = vmul.f32 %v292, 0.125
        %v294 = vrsqrt.pop %v293
        %v295 = vmul.f32 %v293, %v294
        %vm296 = vcmp.eq.f32.partialorder %v293, inf
        %v297 = vsel %vm296, %v293, %v295
        %vm298 = vcmp.eq.f32.partialorder %v293, 0.0
        %v299 = vand.u32 %v293, 2147483648
        %v300 = vsel %vm298, %v299, %v297
        %v301 = vmul.f32 %v300, 0.00495
        %v302 = vld [vmem:[%s238] sm:$0xff]
        %v303 = vmul.f32 %v301, %v302
        %v304 = vadd.f32 %v293, %v303
        %s305 = scalar_lea.vmem %s238, 8 [#allocation7]
        %v306 = vld [vmem:[%s305] sm:$0xff]
        %v307 = vmul.f32 %v306, 0.0145
        %v308 = vadd.f32 %v304, %v307
        %v309 = vmax.f32 %v308, 0.0
        %v310 = vmin.f32 %v309, 1.0
        %311 = vst [vmem:[%s265] sm:$0xff] %v310
        %s312 = sand.u32 %s125, 1
        %s313 = scalar_lea.sflag [#allocation4], %s312
        %s314 = sand.u32 %s125, 1
        %s315 = smul.addr %s314, 8
        %s316 = scalar_lea.vmem [#allocation8], %s315
        // Predicated region
        $region45: #{tpu_custom_call.1} parent=31 // pred_check
          %p317 = pneg %p135
        $region46: #{tpu_custom_call.1} parent=31 // pred_check_branch
          %319 = sbr.rel (%p317) target = $region48
        $region47: #{tpu_custom_call.1} parent=31 // pred_region
          %s321 = ssub.s32 128, 128
          %322 = vsyncadd %s313, %s321
          %s323 = sadd.s32 %s25, %s26
          %s324 = smul.addr %s323, 128
          %s325 = scalar_lea.hbm %s3, %s324
          %s327 = sshll.u32 %s316, 4
          %s328 = int_to_ptr.vmem [resolvable:$true] %s327
          %330 = dma.vmem_to_hbm [thread:$0]  %s328, 128, %s325, %s313
        $region48: #{tpu_custom_call.1} parent=31 // pred_fallthru
          _
      $region32: #{tpu_custom_call.1} parent=5 // pred_fallthru
        _
      %p331 = scmp.le.s32.totalorder 2, %s16
      // Predicated region
      $region49: #{tpu_custom_call.1} parent=5 // pred_check
        %p332 = pneg %p331
      $region50: #{tpu_custom_call.1} parent=5 // pred_check_branch
        %334 = sbr.rel (%p332) target = $region52
      $region51: #{tpu_custom_call.1} parent=5 // pred_region
        %s335 = ssub.s32 %s16, 2
        // Predicated region
        $region53: #{tpu_custom_call.1} parent=51 // pred_check
          %p336 = pneg %p141
        $region54: #{tpu_custom_call.1} parent=51 // pred_check_branch
          %338 = sbr.rel (%p336) target = $region56
        $region55: #{tpu_custom_call.1} parent=51 // pred_region
          %s339 = sand.u32 %s126, 1
          %s340 = scalar_lea.sflag [#allocation4], %s339
          %s341 = sand.u32 %s126, 1
          %s342 = smul.addr %s341, 8
          %s343 = scalar_lea.vmem [#allocation8], %s342
          %344 = dma.done %s340, 128
        $region56: #{tpu_custom_call.1} parent=51 // pred_fallthru
          _
      $region52: #{tpu_custom_call.1} parent=5 // pred_fallthru
        _
    $region6: #{tpu_custom_call.1} parent=1 // loop_footer
      %s20 = sadd.s32 1, %s16
    $region7: #{tpu_custom_call.1} parent=1 // loop_footer_branch
      %15 = sbr.rel target = $region3
    $region8: #{tpu_custom_call.1} parent=1 // loop_exit
      _
    %345 = vsyncpa [#allocation3], 1
    %s346 = scalar_lea.sflag [#allocation3], 1
    %347 = vsyncpa %s346, 1
    %348 = vsyncpa [#allocation6], 1
    %s349 = scalar_lea.sflag [#allocation6], 1
    %350 = vsyncpa %s349, 1
    %351 = vsyncpa [#allocation4], 1
    %s352 = scalar_lea.sflag [#allocation4], 1
    %353 = vsyncpa %s352, 1

</llo_original>
